<compile_context>
chip_gen: v7x
topology: tpu7x:2x2x1
jax: 0.10.0
libtpu: 0.0.40
codegen_flags: <defaults>
</compile_context>

<pallas_src>
import functools
import math

import jax
import jax.numpy as jnp
from jax.experimental import pallas as pl
from jax.experimental.pallas import tpu as pltpu


def rnn_kernel(pre_ref, whh_ref, h0_ref, hseq_ref):
    """pre_ref : (S, B, H)  precomputed x @ W_ih^T + b_ih + b_hh
       whh_ref : (H, H)     W_hh^T
       h0_ref  : (B, H)     initial hidden state
       hseq_ref: (S, B, H)  output hidden states (resident full block)"""
    S = pre_ref.shape[0]

    pre = pre_ref[...]          # (S, B, H) f32, loaded once
    whh = whh_ref[...]          # (H, H)    f32, loaded once
    h = h0_ref[...]             # (B, H)    hidden state lives in registers

    # Fully unrolled time loop (S is small & static). One MXU matmul + tanh
    # per step on the serial critical path; h never round-trips through VMEM.
    for t in range(S):
        h = jnp.tanh(pre[t]
                     + jnp.dot(h, whh, preferred_element_type=jnp.float32))
        # Static-index store into the resident VMEM output block; the HBM
        # writeback of the whole (S, B, H) array happens once at the end.
        hseq_ref[t] = h.astype(hseq_ref.dtype)


@jax.jit
def rnn_forward(x, w_ih, w_hh, b_ih, b_hh, h0):
    S, B, I = x.shape
    H = w_hh.shape[0]

    # Hoisted, non-recurrent input projection for ALL timesteps at once
    # (with I=1 this is effectively a rank-1 broadcast multiply) + fused bias.
    pre = (jnp.einsum("sbi,hi->sbh", x, w_ih,
                      preferred_element_type=jnp.float32)
           + (b_ih + b_hh)).astype(jnp.float32)        # (S, B, H)

    whh_t = w_hh.T.astype(jnp.float32)                 # (H, H)
    h0_2d = h0.reshape(B, H).astype(jnp.float32)       # (B, H)

    cost = pl.CostEstimate(
        flops=2 * S * B * H * H + 2 * S * B * H,
        transcendentals=S * B * H,
        bytes_accessed=4 * (pre.size + whh_t.size + h0_2d.size + S * B * H),
    )

    h_seq = pl.pallas_call(
        rnn_kernel,
        out_shape=jax.ShapeDtypeStruct((S, B, H), jnp.float32),
        grid=(1,),
        in_specs=[
            pl.BlockSpec((S, B, H), lambda i: (0, 0, 0)),   # pre (full)
            pl.BlockSpec((H, H), lambda i: (0, 0)),          # W_hh^T (full)
            pl.BlockSpec((B, H), lambda i: (0, 0)),          # h0 (full)
        ],
        out_specs=pl.BlockSpec((S, B, H), lambda i: (0, 0, 0)),
        compiler_params=pltpu.CompilerParams(
            dimension_semantics=("arbitrary",)),
        cost_estimate=cost,
    )(pre, whh_t, h0_2d)

    h_last = h_seq[-1:]                                 # (1, B, H)
    return h_seq, h_last


def reference_rnn(x, w_ih, w_hh, b_ih, b_hh, h0):
    def step(h, x_t):
        h_new = jnp.tanh(x_t @ w_ih.T + b_ih + h @ w_hh.T + b_hh)
        return h_new, h_new
    h_final, h_seq = jax.lax.scan(step, h0[0], x)
    return h_seq, h_final[None]


if __name__ == "__main__":
    # Module defaults for the RNN core: input_size=1, hidden_size=20, tanh.
    seq_len, batch, input_size, hidden_size = 8, 2, 1, 20

    key = jax.random.PRNGKey(0)
    kx, kwi, kwh, kbi, kbh = jax.random.split(key, 5)

    # PyTorch-style uniform(-1/sqrt(H), 1/sqrt(H)) init.
    bound = 1.0 / math.sqrt(hidden_size)
    w_ih = jax.random.uniform(kwi, (hidden_size, input_size), jnp.float32, -bound, bound)
    w_hh = jax.random.uniform(kwh, (hidden_size, hidden_size), jnp.float32, -bound, bound)
    b_ih = jax.random.uniform(kbi, (hidden_size,), jnp.float32, -bound, bound)
    b_hh = jax.random.uniform(kbh, (hidden_size,), jnp.float32, -bound, bound)

    x = jax.random.normal(kx, (seq_len, batch, input_size), jnp.float32)
    # forward() with h=None -> zero initial hidden state.
    h0 = jnp.zeros((1, batch, hidden_size), jnp.float32)

    h_seq, h_last = rnn_forward(x, w_ih, w_hh, b_ih, b_hh, h0)
    jax.block_until_ready((h_seq, h_last))

    ref_seq, ref_last = reference_rnn(x, w_ih, w_hh, b_ih, b_hh, h0)
    assert h_seq.shape == (seq_len, batch, hidden_size)
    assert h_last.shape == (1, batch, hidden_size)
    assert jnp.allclose(h_seq, ref_seq, atol=1e-5, rtol=1e-5)
    assert jnp.allclose(h_last, ref_last, atol=1e-5, rtol=1e-5)

    # TODO(synk): the classifier head / save() of RNN_Classifier (torch.save
    # host I/O) has no kernel equivalent and is not implemented here.
    print("KERNEL_OK")
</pallas_src>

<mosaic_0001>
module attributes {stable_mosaic.version = 11 : i64} {
  func.func @rnn_kernel(%arg0: i32, %arg1: memref<8x2x20xf32, #tpu.memory_space<vmem>>, %arg2: memref<20x20xf32, #tpu.memory_space<vmem>>, %arg3: memref<2x20xf32, #tpu.memory_space<vmem>>, %arg4: memref<8x2x20xf32, #tpu.memory_space<vmem>>) attributes {dimension_semantics = [#tpu.dimension_semantics<arbitrary>], iteration_bounds = array<i64: 1>, scalar_prefetch = 0 : i64, scratch_operands = 0 : i64, tpu.core_type = #tpu.core_type<tc>, window_params = [{pipeline_mode = #tpu.pipeline_mode<synchronous>, transform_indices = @transform_0, window_bounds = array<i64: 8, 2, 20>}, {pipeline_mode = #tpu.pipeline_mode<synchronous>, transform_indices = @transform_1, window_bounds = array<i64: 20, 20>}, {pipeline_mode = #tpu.pipeline_mode<synchronous>, transform_indices = @transform_2, window_bounds = array<i64: 2, 20>}, {pipeline_mode = #tpu.pipeline_mode<synchronous>, transform_indices = @transform_3, window_bounds = array<i64: 8, 2, 20>}]} {
    %c0 = arith.constant 0 : index
    %c0_0 = arith.constant 0 : index
    %c0_1 = arith.constant 0 : index
    %0 = vector.load %arg1[%c0, %c0_0, %c0_1] : memref<8x2x20xf32, #tpu.memory_space<vmem>>, vector<8x2x20xf32>
    %c0_2 = arith.constant 0 : index
    %c0_3 = arith.constant 0 : index
    %1 = vector.load %arg2[%c0_2, %c0_3] : memref<20x20xf32, #tpu.memory_space<vmem>>, vector<20x20xf32>
    %c0_4 = arith.constant 0 : index
    %c0_5 = arith.constant 0 : index
    %2 = vector.load %arg3[%c0_4, %c0_5] : memref<2x20xf32, #tpu.memory_space<vmem>>, vector<2x20xf32>
    %3 = vector.extract_strided_slice %0 {offsets = [0, 0, 0], sizes = [1, 2, 20], strides = [1, 1, 1]} : vector<8x2x20xf32> to vector<1x2x20xf32>
    %4 = vector.shape_cast %3 : vector<1x2x20xf32> to vector<2x20xf32>
    %cst = arith.constant dense<0.000000e+00> : vector<2x20xf32>
    %5 = tpu.matmul %2, %1, %cst {dimension_numbers = #tpu.dot_dimension_numbers<[1], [0], [0], [1], [0, 0, 1, 1], [], []>} : vector<2x20xf32>, vector<20x20xf32>, vector<2x20xf32> -> vector<2x20xf32>
    %6 = arith.addf %4, %5 : vector<2x20xf32>
    %7 = math.tanh %6 : vector<2x20xf32>
    %c0_6 = arith.constant 0 : index
    %c0_7 = arith.constant 0 : index
    %c0_8 = arith.constant 0 : index
    %8 = vector.load %arg4[%c0_6, %c0_7, %c0_8] : memref<8x2x20xf32, #tpu.memory_space<vmem>>, vector<1x2x20xf32>
    %9 = vector.shape_cast %8 : vector<1x2x20xf32> to vector<2x20xf32>
    %10 = vector.shape_cast %7 : vector<2x20xf32> to vector<1x2x20xf32>
    tpu.vector_store %arg4[%c0_6, %c0_7, %c0_8], %10 {strides = array<i32>} : memref<8x2x20xf32, #tpu.memory_space<vmem>>, vector<1x2x20xf32>,
    %11 = vector.extract_strided_slice %0 {offsets = [1, 0, 0], sizes = [1, 2, 20], strides = [1, 1, 1]} : vector<8x2x20xf32> to vector<1x2x20xf32>
    %12 = vector.shape_cast %11 : vector<1x2x20xf32> to vector<2x20xf32>
    %cst_9 = arith.constant dense<0.000000e+00> : vector<2x20xf32>
    %13 = tpu.matmul %7, %1, %cst_9 {dimension_numbers = #tpu.dot_dimension_numbers<[1], [0], [0], [1], [0, 0, 1, 1], [], []>} : vector<2x20xf32>, vector<20x20xf32>, vector<2x20xf32> -> vector<2x20xf32>
    %14 = arith.addf %12, %13 : vector<2x20xf32>
    %15 = math.tanh %14 : vector<2x20xf32>
    %c1 = arith.constant 1 : index
    %c0_10 = arith.constant 0 : index
    %c0_11 = arith.constant 0 : index
    %16 = vector.load %arg4[%c1, %c0_10, %c0_11] : memref<8x2x20xf32, #tpu.memory_space<vmem>>, vector<1x2x20xf32>
    %17 = vector.shape_cast %16 : vector<1x2x20xf32> to vector<2x20xf32>
    %18 = vector.shape_cast %15 : vector<2x20xf32> to vector<1x2x20xf32>
    tpu.vector_store %arg4[%c1, %c0_10, %c0_11], %18 {strides = array<i32>} : memref<8x2x20xf32, #tpu.memory_space<vmem>>, vector<1x2x20xf32>,
    %19 = vector.extract_strided_slice %0 {offsets = [2, 0, 0], sizes = [1, 2, 20], strides = [1, 1, 1]} : vector<8x2x20xf32> to vector<1x2x20xf32>
    %20 = vector.shape_cast %19 : vector<1x2x20xf32> to vector<2x20xf32>
    %cst_12 = arith.constant dense<0.000000e+00> : vector<2x20xf32>
    %21 = tpu.matmul %15, %1, %cst_12 {dimension_numbers = #tpu.dot_dimension_numbers<[1], [0], [0], [1], [0, 0, 1, 1], [], []>} : vector<2x20xf32>, vector<20x20xf32>, vector<2x20xf32> -> vector<2x20xf32>
    %22 = arith.addf %20, %21 : vector<2x20xf32>
    %23 = math.tanh %22 : vector<2x20xf32>
    %c2 = arith.constant 2 : index
    %c0_13 = arith.constant 0 : index
    %c0_14 = arith.constant 0 : index
    %24 = vector.load %arg4[%c2, %c0_13, %c0_14] : memref<8x2x20xf32, #tpu.memory_space<vmem>>, vector<1x2x20xf32>
    %25 = vector.shape_cast %24 : vector<1x2x20xf32> to vector<2x20xf32>
    %26 = vector.shape_cast %23 : vector<2x20xf32> to vector<1x2x20xf32>
    tpu.vector_store %arg4[%c2, %c0_13, %c0_14], %26 {strides = array<i32>} : memref<8x2x20xf32, #tpu.memory_space<vmem>>, vector<1x2x20xf32>,
    %27 = vector.extract_strided_slice %0 {offsets = [3, 0, 0], sizes = [1, 2, 20], strides = [1, 1, 1]} : vector<8x2x20xf32> to vector<1x2x20xf32>
    %28 = vector.shape_cast %27 : vector<1x2x20xf32> to vector<2x20xf32>
    %cst_15 = arith.constant dense<0.000000e+00> : vector<2x20xf32>
    %29 = tpu.matmul %23, %1, %cst_15 {dimension_numbers = #tpu.dot_dimension_numbers<[1], [0], [0], [1], [0, 0, 1, 1], [], []>} : vector<2x20xf32>, vector<20x20xf32>, vector<2x20xf32> -> vector<2x20xf32>
    %30 = arith.addf %28, %29 : vector<2x20xf32>
    %31 = math.tanh %30 : vector<2x20xf32>
    %c3 = arith.constant 3 : index
    %c0_16 = arith.constant 0 : index
    %c0_17 = arith.constant 0 : index
    %32 = vector.load %arg4[%c3, %c0_16, %c0_17] : memref<8x2x20xf32, #tpu.memory_space<vmem>>, vector<1x2x20xf32>
    %33 = vector.shape_cast %32 : vector<1x2x20xf32> to vector<2x20xf32>
    %34 = vector.shape_cast %31 : vector<2x20xf32> to vector<1x2x20xf32>
    tpu.vector_store %arg4[%c3, %c0_16, %c0_17], %34 {strides = array<i32>} : memref<8x2x20xf32, #tpu.memory_space<vmem>>, vector<1x2x20xf32>,
    %35 = vector.extract_strided_slice %0 {offsets = [4, 0, 0], sizes = [1, 2, 20], strides = [1, 1, 1]} : vector<8x2x20xf32> to vector<1x2x20xf32>
    %36 = vector.shape_cast %35 : vector<1x2x20xf32> to vector<2x20xf32>
    %cst_18 = arith.constant dense<0.000000e+00> : vector<2x20xf32>
    %37 = tpu.matmul %31, %1, %cst_18 {dimension_numbers = #tpu.dot_dimension_numbers<[1], [0], [0], [1], [0, 0, 1, 1], [], []>} : vector<2x20xf32>, vector<20x20xf32>, vector<2x20xf32> -> vector<2x20xf32>
    %38 = arith.addf %36, %37 : vector<2x20xf32>
    %39 = math.tanh %38 : vector<2x20xf32>
    %c4 = arith.constant 4 : index
    %c0_19 = arith.constant 0 : index
    %c0_20 = arith.constant 0 : index
    %40 = vector.load %arg4[%c4, %c0_19, %c0_20] : memref<8x2x20xf32, #tpu.memory_space<vmem>>, vector<1x2x20xf32>
    %41 = vector.shape_cast %40 : vector<1x2x20xf32> to vector<2x20xf32>
    %42 = vector.shape_cast %39 : vector<2x20xf32> to vector<1x2x20xf32>
    tpu.vector_store %arg4[%c4, %c0_19, %c0_20], %42 {strides = array<i32>} : memref<8x2x20xf32, #tpu.memory_space<vmem>>, vector<1x2x20xf32>,
    %43 = vector.extract_strided_slice %0 {offsets = [5, 0, 0], sizes = [1, 2, 20], strides = [1, 1, 1]} : vector<8x2x20xf32> to vector<1x2x20xf32>
    %44 = vector.shape_cast %43 : vector<1x2x20xf32> to vector<2x20xf32>
    %cst_21 = arith.constant dense<0.000000e+00> : vector<2x20xf32>
    %45 = tpu.matmul %39, %1, %cst_21 {dimension_numbers = #tpu.dot_dimension_numbers<[1], [0], [0], [1], [0, 0, 1, 1], [], []>} : vector<2x20xf32>, vector<20x20xf32>, vector<2x20xf32> -> vector<2x20xf32>
    %46 = arith.addf %44, %45 : vector<2x20xf32>
    %47 = math.tanh %46 : vector<2x20xf32>
    %c5 = arith.constant 5 : index
    %c0_22 = arith.constant 0 : index
    %c0_23 = arith.constant 0 : index
    %48 = vector.load %arg4[%c5, %c0_22, %c0_23] : memref<8x2x20xf32, #tpu.memory_space<vmem>>, vector<1x2x20xf32>
    %49 = vector.shape_cast %48 : vector<1x2x20xf32> to vector<2x20xf32>
    %50 = vector.shape_cast %47 : vector<2x20xf32> to vector<1x2x20xf32>
    tpu.vector_store %arg4[%c5, %c0_22, %c0_23], %50 {strides = array<i32>} : memref<8x2x20xf32, #tpu.memory_space<vmem>>, vector<1x2x20xf32>,
    %51 = vector.extract_strided_slice %0 {offsets = [6, 0, 0], sizes = [1, 2, 20], strides = [1, 1, 1]} : vector<8x2x20xf32> to vector<1x2x20xf32>
    %52 = vector.shape_cast %51 : vector<1x2x20xf32> to vector<2x20xf32>
    %cst_24 = arith.constant dense<0.000000e+00> : vector<2x20xf32>
    %53 = tpu.matmul %47, %1, %cst_24 {dimension_numbers = #tpu.dot_dimension_numbers<[1], [0], [0], [1], [0, 0, 1, 1], [], []>} : vector<2x20xf32>, vector<20x20xf32>, vector<2x20xf32> -> vector<2x20xf32>
    %54 = arith.addf %52, %53 : vector<2x20xf32>
    %55 = math.tanh %54 : vector<2x20xf32>
    %c6 = arith.constant 6 : index
    %c0_25 = arith.constant 0 : index
    %c0_26 = arith.constant 0 : index
    %56 = vector.load %arg4[%c6, %c0_25, %c0_26] : memref<8x2x20xf32, #tpu.memory_space<vmem>>, vector<1x2x20xf32>
    %57 = vector.shape_cast %56 : vector<1x2x20xf32> to vector<2x20xf32>
    %58 = vector.shape_cast %55 : vector<2x20xf32> to vector<1x2x20xf32>
    tpu.vector_store %arg4[%c6, %c0_25, %c0_26], %58 {strides = array<i32>} : memref<8x2x20xf32, #tpu.memory_space<vmem>>, vector<1x2x20xf32>,
    %59 = vector.extract_strided_slice %0 {offsets = [7, 0, 0], sizes = [1, 2, 20], strides = [1, 1, 1]} : vector<8x2x20xf32> to vector<1x2x20xf32>
    %60 = vector.shape_cast %59 : vector<1x2x20xf32> to vector<2x20xf32>
    %cst_27 = arith.constant dense<0.000000e+00> : vector<2x20xf32>
    %61 = tpu.matmul %55, %1, %cst_27 {dimension_numbers = #tpu.dot_dimension_numbers<[1], [0], [0], [1], [0, 0, 1, 1], [], []>} : vector<2x20xf32>, vector<20x20xf32>, vector<2x20xf32> -> vector<2x20xf32>
    %62 = arith.addf %60, %61 : vector<2x20xf32>
    %63 = math.tanh %62 : vector<2x20xf32>
    %c7 = arith.constant 7 : index
    %c0_28 = arith.constant 0 : index
    %c0_29 = arith.constant 0 : index
    %64 = vector.load %arg4[%c7, %c0_28, %c0_29] : memref<8x2x20xf32, #tpu.memory_space<vmem>>, vector<1x2x20xf32>
    %65 = vector.shape_cast %64 : vector<1x2x20xf32> to vector<2x20xf32>
    %66 = vector.shape_cast %63 : vector<2x20xf32> to vector<1x2x20xf32>
    tpu.vector_store %arg4[%c7, %c0_28, %c0_29], %66 {strides = array<i32>} : memref<8x2x20xf32, #tpu.memory_space<vmem>>, vector<1x2x20xf32>,
    return
  }
  func.func @transform_0(%arg0: i32) -> (i32, i32, i32) {
    %c0_i32 = arith.constant 0 : i32
    %c0_i32_0 = arith.constant 0 : i32
    %c0_i32_1 = arith.constant 0 : i32
    %c0_i32_2 = arith.constant 0 : i32
    return %c0_i32, %c0_i32_0, %c0_i32_1 : i32, i32, i32
  }
  func.func @transform_1(%arg0: i32) -> (i32, i32) {
    %c0_i32 = arith.constant 0 : i32
    %c0_i32_0 = arith.constant 0 : i32
    %c0_i32_1 = arith.constant 0 : i32
    return %c0_i32, %c0_i32_0 : i32, i32
  }
  func.func @transform_2(%arg0: i32) -> (i32, i32) {
    %c0_i32 = arith.constant 0 : i32
    %c0_i32_0 = arith.constant 0 : i32
    %c0_i32_1 = arith.constant 0 : i32
    return %c0_i32, %c0_i32_0 : i32, i32
  }
  func.func @transform_3(%arg0: i32) -> (i32, i32, i32) {
    %c0_i32 = arith.constant 0 : i32
    %c0_i32_0 = arith.constant 0 : i32
    %c0_i32_1 = arith.constant 0 : i32
    %c0_i32_2 = arith.constant 0 : i32
    return %c0_i32, %c0_i32_0, %c0_i32_1 : i32, i32, i32
  }
}

</mosaic_0001>

<llo_original>
// kernel: rnn_forward.1
$region0: #{rnn_forward.1}
  #allocation0 [shape = 'u32[]', space=smem, size = 0x4, offset = 0x4, fixed_abs, tag = 'smem constant byte address 0x4 - core index']
  #allocation1 [shape = 'u32[144,128]{1,0:T(1,128)}', space=vmem, size = 0x12000, scoped, tag = 'internal scratch']
  %s0 = inlined_call_operand.vmem [shape: f32[8,2,20], index: 0, kind: input, shape index: {}]
  %s1 = inlined_call_operand.vmem [shape: f32[20,20], index: 1, kind: input, shape index: {}]
  %s2 = inlined_call_operand.vmem [shape: f32[2,20], index: 2, kind: input, shape index: {}]
  %s3 = inlined_call_operand.vmem [shape: f32[8,2,20], index: 3, kind: output, shape index: {}]
  %s4 = sld [smem:[#allocation0]]
  $region22: #{rnn_forward.1} parent=0
    _
  %s6 = ssub.s32 1, %s4
  %s7 = scalar_select 0, %s6, %s4
  // Predicated region
  $region2: #{rnn_forward.1} parent=0 // pred_check
    _
  $region3: #{rnn_forward.1} parent=0 // pred_check_branch
    %9 = sbr.rel (0) target = $region5
  $region4: #{rnn_forward.1} parent=0 // pred_region
    _
  $region5: #{rnn_forward.1} parent=0 // pred_fallthru
    _
  // Predicated region
  $region6: #{rnn_forward.1} parent=0 // pred_check
    _
  $region7: #{rnn_forward.1} parent=0 // pred_check_branch
    %11 = sbr.rel (0) target = $region9
  $region8: #{rnn_forward.1} parent=0 // pred_region
    _
  $region9: #{rnn_forward.1} parent=0 // pred_fallthru
    _
  // Predicated region
  $region10: #{rnn_forward.1} parent=0 // pred_check
    _
  $region11: #{rnn_forward.1} parent=0 // pred_check_branch
    %13 = sbr.rel (0) target = $region13
  $region12: #{rnn_forward.1} parent=0 // pred_region
    _
  $region13: #{rnn_forward.1} parent=0 // pred_fallthru
    _
  %v14 = vld [vmem:[%s0] sm:$0x3]
  %v15 = vld [vmem:[%s0 + $0x2] sm:$0x3]
  %v16 = vld [vmem:[%s0 + $0x4] sm:$0x3]
  %v17 = vld [vmem:[%s0 + $0x6] sm:$0x3]
  %v18 = vld [vmem:[%s0 + $0x8] sm:$0x3]
  %v19 = vld [vmem:[%s0 + $0xa] sm:$0x3]
  %v20 = vld [vmem:[%s0 + $0xc] sm:$0x3]
  %v21 = vld [vmem:[%s0 + $0xe] sm:$0x3]
  %v22 = vld [vmem:[%s1] sm:$0xff]
  %v23 = vld [vmem:[%s1 + $0x8] sm:$0xff]
  %v24 = vld [vmem:[%s1 + $0x10] sm:$0xf]
  %v25 = vld [vmem:[%s2] sm:$0x3]
  %vm26 = vcmask 162816
  %v28 = vsel %vm26, %v25, 0
  %vm30 = vcmask 1043456
  %v32 = vsel %vm30, %v24, 0
  %34 = vmatprep.subr.mxu0 0.0
  %35 = vmatpush1.msra.mxu0 %v22
  %36 = vmatprep.subr.mxu0 0.0
  %37 = vmatpush1.msra.mxu0 %v23
  %38 = vmatprep.subr.mxu0 0.0
  %39 = vmatpush1.msra.mxu0 %v32
  %40 = vmatprep.subr.mxu0 0.0
  %41 = vmatpush1.msra.mxu0 0.0
  %42 = vmatprep.subr.mxu0 0.0
  %43 = vmatpush1.msra.mxu0 0.0
  %44 = vmatprep.subr.mxu0 0.0
  %45 = vmatpush1.msra.mxu0 0.0
  %46 = vmatprep.subr.mxu0 0.0
  %47 = vmatpush1.msra.mxu0 0.0
  %48 = vmatprep.subr.mxu0 0.0
  %49 = vmatpush1.msra.mxu0 0.0
  %50 = vmatprep.subr.mxu0 0.0
  %51 = vmatpush1.msra.mxu0 0.0
  %52 = vmatprep.subr.mxu0 0.0
  %53 = vmatpush1.msra.mxu0 0.0
  %54 = vmatprep.subr.mxu0 0.0
  %55 = vmatpush1.msra.mxu0 0.0
  %56 = vmatprep.subr.mxu0 0.0
  %57 = vmatpush1.msra.mxu0 0.0
  %58 = vmatprep.subr.mxu0 0.0
  %59 = vmatpush1.msra.mxu0 0.0
  %60 = vmatprep.subr.mxu0 0.0
  %61 = vmatpush1.msra.mxu0 0.0
  %62 = vmatprep.subr.mxu0 0.0
  %63 = vmatpush1.msra.mxu0 0.0
  %64 = vmatprep.subr.mxu0 0.0
  %65 = vmatpush1.msra.mxu0 0.0
  %66 = vmatprep.subr.mxu0 0.0
  %67 = vmatpush1.msra.mxu0 0.0
  %68 = vmatprep.subr.mxu0 0.0
  %69 = vmatpush1.msra.mxu0 0.0
  %70 = vmatprep.subr.mxu0 0.0
  %71 = vmatpush1.msra.mxu0 0.0
  %72 = vmatprep.subr.mxu0 0.0
  %73 = vmatpush1.msra.mxu0 0.0
  %74 = vmatprep.subr.mxu0 0.0
  %75 = vmatpush1.msra.mxu0 0.0
  %76 = vmatprep.subr.mxu0 0.0
  %77 = vmatpush1.msra.mxu0 0.0
  %78 = vmatprep.subr.mxu0 0.0
  %79 = vmatpush1.msra.mxu0 0.0
  %80 = vmatprep.subr.mxu0 0.0
  %81 = vmatpush1.msra.mxu0 0.0
  %82 = vmatprep.subr.mxu0 0.0
  %83 = vmatpush1.msra.mxu0 0.0
  %84 = vmatprep.subr.mxu0 0.0
  %85 = vmatpush1.msra.mxu0 0.0
  %86 = vmatprep.subr.mxu0 0.0
  %87 = vmatpush1.msra.mxu0 0.0
  %88 = vmatprep.subr.mxu0 0.0
  %89 = vmatpush1.msra.mxu0 0.0
  %90 = vmatprep.subr.mxu0 0.0
  %91 = vmatpush1.msra.mxu0 0.0
  %92 = vmatprep.subr.mxu0 0.0
  %93 = vmatpush1.msra.mxu0 0.0
  %94 = vmatprep.subr.mxu0 0.0
  %95 = vmatpush1.msra.mxu0 0.0
  %96 = vmatprep.subr.mxu0 0.0
  %97 = vmatpush1.msra.mxu0 0.0
  %98 = vmatprep.mubr.f32.mxu0 0.0
  %99 = vmatmul.mubr.f32.gmra.mrb[0].mxu0 %v28
  %v100 = vpop.f32.mrb[0].mxu0
  %v101 = vadd.f32 0.0, %v100
  %v102 = vpop.f32.mrb[0].mxu0
  %103 = vdwg.mxu0
  %v104 = vadd.f32 %v14, %v101
  %v105 = vtanh.pop %v104
  %vm106 = vcmask 156672
  %107 = vst.msk [vmem:[%s3] sm:$0x3] %vm106, %v105
  %v109 = vsel %vm26, %v105, 0
  %111 = vmatprep.subr.mxu0 0.0
  %112 = vmatpush1.msra.mxu0 %v22
  %113 = vmatprep.subr.mxu0 0.0
  %114 = vmatpush1.msra.mxu0 %v23
  %115 = vmatprep.subr.mxu0 0.0
  %116 = vmatpush1.msra.mxu0 %v32
  %117 = vmatprep.subr.mxu0 0.0
  %118 = vmatpush1.msra.mxu0 0.0
  %119 = vmatprep.subr.mxu0 0.0
  %120 = vmatpush1.msra.mxu0 0.0
  %121 = vmatprep.subr.mxu0 0.0
  %122 = vmatpush1.msra.mxu0 0.0
  %123 = vmatprep.subr.mxu0 0.0
  %124 = vmatpush1.msra.mxu0 0.0
  %125 = vmatprep.subr.mxu0 0.0
  %126 = vmatpush1.msra.mxu0 0.0
  %127 = vmatprep.subr.mxu0 0.0
  %128 = vmatpush1.msra.mxu0 0.0
  %129 = vmatprep.subr.mxu0 0.0
  %130 = vmatpush1.msra.mxu0 0.0
  %131 = vmatprep.subr.mxu0 0.0
  %132 = vmatpush1.msra.mxu0 0.0
  %133 = vmatprep.subr.mxu0 0.0
  %134 = vmatpush1.msra.mxu0 0.0
  %135 = vmatprep.subr.mxu0 0.0
  %136 = vmatpush1.msra.mxu0 0.0
  %137 = vmatprep.subr.mxu0 0.0
  %138 = vmatpush1.msra.mxu0 0.0
  %139 = vmatprep.subr.mxu0 0.0
  %140 = vmatpush1.msra.mxu0 0.0
  %141 = vmatprep.subr.mxu0 0.0
  %142 = vmatpush1.msra.mxu0 0.0
  %143 = vmatprep.subr.mxu0 0.0
  %144 = vmatpush1.msra.mxu0 0.0
  %145 = vmatprep.subr.mxu0 0.0
  %146 = vmatpush1.msra.mxu0 0.0
  %147 = vmatprep.subr.mxu0 0.0
  %148 = vmatpush1.msra.mxu0 0.0
  %149 = vmatprep.subr.mxu0 0.0
  %150 = vmatpush1.msra.mxu0 0.0
  %151 = vmatprep.subr.mxu0 0.0
  %152 = vmatpush1.msra.mxu0 0.0
  %153 = vmatprep.subr.mxu0 0.0
  %154 = vmatpush1.msra.mxu0 0.0
  %155 = vmatprep.subr.mxu0 0.0
  %156 = vmatpush1.msra.mxu0 0.0
  %157 = vmatprep.subr.mxu0 0.0
  %158 = vmatpush1.msra.mxu0 0.0
  %159 = vmatprep.subr.mxu0 0.0
  %160 = vmatpush1.msra.mxu0 0.0
  %161 = vmatprep.subr.mxu0 0.0
  %162 = vmatpush1.msra.mxu0 0.0
  %163 = vmatprep.subr.mxu0 0.0
  %164 = vmatpush1.msra.mxu0 0.0
  %165 = vmatprep.subr.mxu0 0.0
  %166 = vmatpush1.msra.mxu0 0.0
  %167 = vmatprep.subr.mxu0 0.0
  %168 = vmatpush1.msra.mxu0 0.0
  %169 = vmatprep.subr.mxu0 0.0
  %170 = vmatpush1.msra.mxu0 0.0
  %171 = vmatprep.subr.mxu0 0.0
  %172 = vmatpush1.msra.mxu0 0.0
  %173 = vmatprep.subr.mxu0 0.0
  %174 = vmatpush1.msra.mxu0 0.0
  %175 = vmatprep.mubr.f32.mxu0 0.0
  %176 = vmatmul.mubr.f32.gmra.mrb[0].mxu0 %v109
  %v177 = vpop.f32.mrb[0].mxu0
  %v178 = vadd.f32 0.0, %v177
  %v179 = vpop.f32.mrb[0].mxu0
  %180 = vdwg.mxu0
  %v181 = vadd.f32 %v15, %v178
  %v182 = vtanh.pop %v181
  %s183 = scalar_lea.vmem %s3, 2
  %184 = vst.msk [vmem:[%s183] sm:$0x3] %vm106, %v182
  %v186 = vsel %vm26, %v182, 0
  %188 = vmatprep.subr.mxu0 0.0
  %189 = vmatpush1.msra.mxu0 %v22
  %190 = vmatprep.subr.mxu0 0.0
  %191 = vmatpush1.msra.mxu0 %v23
  %192 = vmatprep.subr.mxu0 0.0
  %193 = vmatpush1.msra.mxu0 %v32
  %194 = vmatprep.subr.mxu0 0.0
  %195 = vmatpush1.msra.mxu0 0.0
  %196 = vmatprep.subr.mxu0 0.0
  %197 = vmatpush1.msra.mxu0 0.0
  %198 = vmatprep.subr.mxu0 0.0
  %199 = vmatpush1.msra.mxu0 0.0
  %200 = vmatprep.subr.mxu0 0.0
  %201 = vmatpush1.msra.mxu0 0.0
  %202 = vmatprep.subr.mxu0 0.0
  %203 = vmatpush1.msra.mxu0 0.0
  %204 = vmatprep.subr.mxu0 0.0
  %205 = vmatpush1.msra.mxu0 0.0
  %206 = vmatprep.subr.mxu0 0.0
  %207 = vmatpush1.msra.mxu0 0.0
  %208 = vmatprep.subr.mxu0 0.0
  %209 = vmatpush1.msra.mxu0 0.0
  %210 = vmatprep.subr.mxu0 0.0
  %211 = vmatpush1.msra.mxu0 0.0
  %212 = vmatprep.subr.mxu0 0.0
  %213 = vmatpush1.msra.mxu0 0.0
  %214 = vmatprep.subr.mxu0 0.0
  %215 = vmatpush1.msra.mxu0 0.0
  %216 = vmatprep.subr.mxu0 0.0
  %217 = vmatpush1.msra.mxu0 0.0
  %218 = vmatprep.subr.mxu0 0.0
  %219 = vmatpush1.msra.mxu0 0.0
  %220 = vmatprep.subr.mxu0 0.0
  %221 = vmatpush1.msra.mxu0 0.0
  %222 = vmatprep.subr.mxu0 0.0
  %223 = vmatpush1.msra.mxu0 0.0
  %224 = vmatprep.subr.mxu0 0.0
  %225 = vmatpush1.msra.mxu0 0.0
  %226 = vmatprep.subr.mxu0 0.0
  %227 = vmatpush1.msra.mxu0 0.0
  %228 = vmatprep.subr.mxu0 0.0
  %229 = vmatpush1.msra.mxu0 0.0
  %230 = vmatprep.subr.mxu0 0.0
  %231 = vmatpush1.msra.mxu0 0.0
  %232 = vmatprep.subr.mxu0 0.0
  %233 = vmatpush1.msra.mxu0 0.0
  %234 = vmatprep.subr.mxu0 0.0
  %235 = vmatpush1.msra.mxu0 0.0
  %236 = vmatprep.subr.mxu0 0.0
  %237 = vmatpush1.msra.mxu0 0.0
  %238 = vmatprep.subr.mxu0 0.0
  %239 = vmatpush1.msra.mxu0 0.0
  %240 = vmatprep.subr.mxu0 0.0
  %241 = vmatpush1.msra.mxu0 0.0
  %242 = vmatprep.subr.mxu0 0.0
  %243 = vmatpush1.msra.mxu0 0.0
  %244 = vmatprep.subr.mxu0 0.0
  %245 = vmatpush1.msra.mxu0 0.0
  %246 = vmatprep.subr.mxu0 0.0
  %247 = vmatpush1.msra.mxu0 0.0
  %248 = vmatprep.subr.mxu0 0.0
  %249 = vmatpush1.msra.mxu0 0.0
  %250 = vmatprep.subr.mxu0 0.0
  %251 = vmatpush1.msra.mxu0 0.0
  %252 = vmatprep.mubr.f32.mxu0 0.0
  %253 = vmatmul.mubr.f32.gmra.mrb[0].mxu0 %v186
  %v254 = vpop.f32.mrb[0].mxu0
  %v255 = vadd.f32 0.0, %v254
  %v256 = vpop.f32.mrb[0].mxu0
  %257 = vdwg.mxu0
  %v258 = vadd.f32 %v16, %v255
  %v259 = vtanh.pop %v258
  %s260 = scalar_lea.vmem %s3, 4
  %261 = vst.msk [vmem:[%s260] sm:$0x3] %vm106, %v259
  %v263 = vsel %vm26, %v259, 0
  %265 = vmatprep.subr.mxu0 0.0
  %266 = vmatpush1.msra.mxu0 %v22
  %267 = vmatprep.subr.mxu0 0.0
  %268 = vmatpush1.msra.mxu0 %v23
  %269 = vmatprep.subr.mxu0 0.0
  %270 = vmatpush1.msra.mxu0 %v32
  %271 = vmatprep.subr.mxu0 0.0
  %272 = vmatpush1.msra.mxu0 0.0
  %273 = vmatprep.subr.mxu0 0.0
  %274 = vmatpush1.msra.mxu0 0.0
  %275 = vmatprep.subr.mxu0 0.0
  %276 = vmatpush1.msra.mxu0 0.0
  %277 = vmatprep.subr.mxu0 0.0
  %278 = vmatpush1.msra.mxu0 0.0
  %279 = vmatprep.subr.mxu0 0.0
  %280 = vmatpush1.msra.mxu0 0.0
  %281 = vmatprep.subr.mxu0 0.0
  %282 = vmatpush1.msra.mxu0 0.0
  %283 = vmatprep.subr.mxu0 0.0
  %284 = vmatpush1.msra.mxu0 0.0
  %285 = vmatprep.subr.mxu0 0.0
  %286 = vmatpush1.msra.mxu0 0.0
  %287 = vmatprep.subr.mxu0 0.0
  %288 = vmatpush1.msra.mxu0 0.0
  %289 = vmatprep.subr.mxu0 0.0
  %290 = vmatpush1.msra.mxu0 0.0
  %291 = vmatprep.subr.mxu0 0.0
  %292 = vmatpush1.msra.mxu0 0.0
  %293 = vmatprep.subr.mxu0 0.0
  %294 = vmatpush1.msra.mxu0 0.0
  %295 = vmatprep.subr.mxu0 0.0
  %296 = vmatpush1.msra.mxu0 0.0
  %297 = vmatprep.subr.mxu0 0.0
  %298 = vmatpush1.msra.mxu0 0.0
  %299 = vmatprep.subr.mxu0 0.0
  %300 = vmatpush1.msra.mxu0 0.0
  %301 = vmatprep.subr.mxu0 0.0
  %302 = vmatpush1.msra.mxu0 0.0
  %303 = vmatprep.subr.mxu0 0.0
  %304 = vmatpush1.msra.mxu0 0.0
  %305 = vmatprep.subr.mxu0 0.0
  %306 = vmatpush1.msra.mxu0 0.0
  %307 = vmatprep.subr.mxu0 0.0
  %308 = vmatpush1.msra.mxu0 0.0
  %309 = vmatprep.subr.mxu0 0.0
  %310 = vmatpush1.msra.mxu0 0.0
  %311 = vmatprep.subr.mxu0 0.0
  %312 = vmatpush1.msra.mxu0 0.0
  %313 = vmatprep.subr.mxu0 0.0
  %314 = vmatpush1.msra.mxu0 0.0
  %315 = vmatprep.subr.mxu0 0.0
  %316 = vmatpush1.msra.mxu0 0.0
  %317 = vmatprep.subr.mxu0 0.0
  %318 = vmatpush1.msra.mxu0 0.0
  %319 = vmatprep.subr.mxu0 0.0
  %320 = vmatpush1.msra.mxu0 0.0
  %321 = vmatprep.subr.mxu0 0.0
  %322 = vmatpush1.msra.mxu0 0.0
  %323 = vmatprep.subr.mxu0 0.0
  %324 = vmatpush1.msra.mxu0 0.0
  %325 = vmatprep.subr.mxu0 0.0
  %326 = vmatpush1.msra.mxu0 0.0
  %327 = vmatprep.subr.mxu0 0.0
  %328 = vmatpush1.msra.mxu0 0.0
  %329 = vmatprep.mubr.f32.mxu0 0.0
  %330 = vmatmul.mubr.f32.gmra.mrb[0].mxu0 %v263
  %v331 = vpop.f32.mrb[0].mxu0
  %v332 = vadd.f32 0.0, %v331
  %v333 = vpop.f32.mrb[0].mxu0
  %334 = vdwg.mxu0
  %v335 = vadd.f32 %v17, %v332
  %v336 = vtanh.pop %v335
  %s337 = scalar_lea.vmem %s3, 6
  %338 = vst.msk [vmem:[%s337] sm:$0x3] %vm106, %v336
  %v340 = vsel %vm26, %v336, 0
  %342 = vmatprep.subr.mxu0 0.0
  %343 = vmatpush1.msra.mxu0 %v22
  %344 = vmatprep.subr.mxu0 0.0
  %345 = vmatpush1.msra.mxu0 %v23
  %346 = vmatprep.subr.mxu0 0.0
  %347 = vmatpush1.msra.mxu0 %v32
  %348 = vmatprep.subr.mxu0 0.0
  %349 = vmatpush1.msra.mxu0 0.0
  %350 = vmatprep.subr.mxu0 0.0
  %351 = vmatpush1.msra.mxu0 0.0
  %352 = vmatprep.subr.mxu0 0.0
  %353 = vmatpush1.msra.mxu0 0.0
  %354 = vmatprep.subr.mxu0 0.0
  %355 = vmatpush1.msra.mxu0 0.0
  %356 = vmatprep.subr.mxu0 0.0
  %357 = vmatpush1.msra.mxu0 0.0
  %358 = vmatprep.subr.mxu0 0.0
  %359 = vmatpush1.msra.mxu0 0.0
  %360 = vmatprep.subr.mxu0 0.0
  %361 = vmatpush1.msra.mxu0 0.0
  %362 = vmatprep.subr.mxu0 0.0
  %363 = vmatpush1.msra.mxu0 0.0
  %364 = vmatprep.subr.mxu0 0.0
  %365 = vmatpush1.msra.mxu0 0.0
  %366 = vmatprep.subr.mxu0 0.0
  %367 = vmatpush1.msra.mxu0 0.0
  %368 = vmatprep.subr.mxu0 0.0
  %369 = vmatpush1.msra.mxu0 0.0
  %370 = vmatprep.subr.mxu0 0.0
  %371 = vmatpush1.msra.mxu0 0.0
  %372 = vmatprep.subr.mxu0 0.0
  %373 = vmatpush1.msra.mxu0 0.0
  %374 = vmatprep.subr.mxu0 0.0
  %375 = vmatpush1.msra.mxu0 0.0
  %376 = vmatprep.subr.mxu0 0.0
  %377 = vmatpush1.msra.mxu0 0.0
  %378 = vmatprep.subr.mxu0 0.0
  %379 = vmatpush1.msra.mxu0 0.0
  %380 = vmatprep.subr.mxu0 0.0
  %381 = vmatpush1.msra.mxu0 0.0
  %382 = vmatprep.subr.mxu0 0.0
  %383 = vmatpush1.msra.mxu0 0.0
  %384 = vmatprep.subr.mxu0 0.0
  %385 = vmatpush1.msra.mxu0 0.0
  %386 = vmatprep.subr.mxu0 0.0
  %387 = vmatpush1.msra.mxu0 0.0
  %388 = vmatprep.subr.mxu0 0.0
  %389 = vmatpush1.msra.mxu0 0.0
  %390 = vmatprep.subr.mxu0 0.0
  %391 = vmatpush1.msra.mxu0 0.0
  %392 = vmatprep.subr.mxu0 0.0
  %393 = vmatpush1.msra.mxu0 0.0
  %394 = vmatprep.subr.mxu0 0.0
  %395 = vmatpush1.msra.mxu0 0.0
  %396 = vmatprep.subr.mxu0 0.0
  %397 = vmatpush1.msra.mxu0 0.0
  %398 = vmatprep.subr.mxu0 0.0
  %399 = vmatpush1.msra.mxu0 0.0
  %400 = vmatprep.subr.mxu0 0.0
  %401 = vmatpush1.msra.mxu0 0.0
  %402 = vmatprep.subr.mxu0 0.0
  %403 = vmatpush1.msra.mxu0 0.0
  %404 = vmatprep.subr.mxu0 0.0
  %405 = vmatpush1.msra.mxu0 0.0
  %406 = vmatprep.mubr.f32.mxu0 0.0
  %407 = vmatmul.mubr.f32.gmra.mrb[0].mxu0 %v340
  %v408 = vpop.f32.mrb[0].mxu0
  %v409 = vadd.f32 0.0, %v408
  %v410 = vpop.f32.mrb[0].mxu0
  %411 = vdwg.mxu0
  %v412 = vadd.f32 %v18, %v409
  %v413 = vtanh.pop %v412
  %s414 = scalar_lea.vmem %s3, 8
  %415 = vst.msk [vmem:[%s414] sm:$0x3] %vm106, %v413
  %v417 = vsel %vm26, %v413, 0
  %419 = vmatprep.subr.mxu0 0.0
  %420 = vmatpush1.msra.mxu0 %v22
  %421 = vmatprep.subr.mxu0 0.0
  %422 = vmatpush1.msra.mxu0 %v23
  %423 = vmatprep.subr.mxu0 0.0
  %424 = vmatpush1.msra.mxu0 %v32
  %425 = vmatprep.subr.mxu0 0.0
  %426 = vmatpush1.msra.mxu0 0.0
  %427 = vmatprep.subr.mxu0 0.0
  %428 = vmatpush1.msra.mxu0 0.0
  %429 = vmatprep.subr.mxu0 0.0
  %430 = vmatpush1.msra.mxu0 0.0
  %431 = vmatprep.subr.mxu0 0.0
  %432 = vmatpush1.msra.mxu0 0.0
  %433 = vmatprep.subr.mxu0 0.0
  %434 = vmatpush1.msra.mxu0 0.0
  %435 = vmatprep.subr.mxu0 0.0
  %436 = vmatpush1.msra.mxu0 0.0
  %437 = vmatprep.subr.mxu0 0.0
  %438 = vmatpush1.msra.mxu0 0.0
  %439 = vmatprep.subr.mxu0 0.0
  %440 = vmatpush1.msra.mxu0 0.0
  %441 = vmatprep.subr.mxu0 0.0
  %442 = vmatpush1.msra.mxu0 0.0
  %443 = vmatprep.subr.mxu0 0.0
  %444 = vmatpush1.msra.mxu0 0.0
  %445 = vmatprep.subr.mxu0 0.0
  %446 = vmatpush1.msra.mxu0 0.0
  %447 = vmatprep.subr.mxu0 0.0
  %448 = vmatpush1.msra.mxu0 0.0
  %449 = vmatprep.subr.mxu0 0.0
  %450 = vmatpush1.msra.mxu0 0.0
  %451 = vmatprep.subr.mxu0 0.0
  %452 = vmatpush1.msra.mxu0 0.0
  %453 = vmatprep.subr.mxu0 0.0
  %454 = vmatpush1.msra.mxu0 0.0
  %455 = vmatprep.subr.mxu0 0.0
  %456 = vmatpush1.msra.mxu0 0.0
  %457 = vmatprep.subr.mxu0 0.0
  %458 = vmatpush1.msra.mxu0 0.0
  %459 = vmatprep.subr.mxu0 0.0
  %460 = vmatpush1.msra.mxu0 0.0
  %461 = vmatprep.subr.mxu0 0.0
  %462 = vmatpush1.msra.mxu0 0.0
  %463 = vmatprep.subr.mxu0 0.0
  %464 = vmatpush1.msra.mxu0 0.0
  %465 = vmatprep.subr.mxu0 0.0
  %466 = vmatpush1.msra.mxu0 0.0
  %467 = vmatprep.subr.mxu0 0.0
  %468 = vmatpush1.msra.mxu0 0.0
  %469 = vmatprep.subr.mxu0 0.0
  %470 = vmatpush1.msra.mxu0 0.0
  %471 = vmatprep.subr.mxu0 0.0
  %472 = vmatpush1.msra.mxu0 0.0
  %473 = vmatprep.subr.mxu0 0.0
  %474 = vmatpush1.msra.mxu0 0.0
  %475 = vmatprep.subr.mxu0 0.0
  %476 = vmatpush1.msra.mxu0 0.0
  %477 = vmatprep.subr.mxu0 0.0
  %478 = vmatpush1.msra.mxu0 0.0
  %479 = vmatprep.subr.mxu0 0.0
  %480 = vmatpush1.msra.mxu0 0.0
  %481 = vmatprep.subr.mxu0 0.0
  %482 = vmatpush1.msra.mxu0 0.0
  %483 = vmatprep.mubr.f32.mxu0 0.0
  %484 = vmatmul.mubr.f32.gmra.mrb[0].mxu0 %v417
  %v485 = vpop.f32.mrb[0].mxu0
  %v486 = vadd.f32 0.0, %v485
  %v487 = vpop.f32.mrb[0].mxu0
  %488 = vdwg.mxu0
  %v489 = vadd.f32 %v19, %v486
  %v490 = vtanh.pop %v489
  %s491 = scalar_lea.vmem %s3, 10
  %492 = vst.msk [vmem:[%s491] sm:$0x3] %vm106, %v490
  %v494 = vsel %vm26, %v490, 0
  %496 = vmatprep.subr.mxu0 0.0
  %497 = vmatpush1.msra.mxu0 %v22
  %498 = vmatprep.subr.mxu0 0.0
  %499 = vmatpush1.msra.mxu0 %v23
  %500 = vmatprep.subr.mxu0 0.0
  %501 = vmatpush1.msra.mxu0 %v32
  %502 = vmatprep.subr.mxu0 0.0
  %503 = vmatpush1.msra.mxu0 0.0
  %504 = vmatprep.subr.mxu0 0.0
  %505 = vmatpush1.msra.mxu0 0.0
  %506 = vmatprep.subr.mxu0 0.0
  %507 = vmatpush1.msra.mxu0 0.0
  %508 = vmatprep.subr.mxu0 0.0
  %509 = vmatpush1.msra.mxu0 0.0
  %510 = vmatprep.subr.mxu0 0.0
  %511 = vmatpush1.msra.mxu0 0.0
  %512 = vmatprep.subr.mxu0 0.0
  %513 = vmatpush1.msra.mxu0 0.0
  %514 = vmatprep.subr.mxu0 0.0
  %515 = vmatpush1.msra.mxu0 0.0
  %516 = vmatprep.subr.mxu0 0.0
  %517 = vmatpush1.msra.mxu0 0.0
  %518 = vmatprep.subr.mxu0 0.0
  %519 = vmatpush1.msra.mxu0 0.0
  %520 = vmatprep.subr.mxu0 0.0
  %521 = vmatpush1.msra.mxu0 0.0
  %522 = vmatprep.subr.mxu0 0.0
  %523 = vmatpush1.msra.mxu0 0.0
  %524 = vmatprep.subr.mxu0 0.0
  %525 = vmatpush1.msra.mxu0 0.0
  %526 = vmatprep.subr.mxu0 0.0
  %527 = vmatpush1.msra.mxu0 0.0
  %528 = vmatprep.subr.mxu0 0.0
  %529 = vmatpush1.msra.mxu0 0.0
  %530 = vmatprep.subr.mxu0 0.0
  %531 = vmatpush1.msra.mxu0 0.0
  %532 = vmatprep.subr.mxu0 0.0
  %533 = vmatpush1.msra.mxu0 0.0
  %534 = vmatprep.subr.mxu0 0.0
  %535 = vmatpush1.msra.mxu0 0.0
  %536 = vmatprep.subr.mxu0 0.0
  %537 = vmatpush1.msra.mxu0 0.0
  %538 = vmatprep.subr.mxu0 0.0
  %539 = vmatpush1.msra.mxu0 0.0
  %540 = vmatprep.subr.mxu0 0.0
  %541 = vmatpush1.msra.mxu0 0.0
  %542 = vmatprep.subr.mxu0 0.0
  %543 = vmatpush1.msra.mxu0 0.0
  %544 = vmatprep.subr.mxu0 0.0
  %545 = vmatpush1.msra.mxu0 0.0
  %546 = vmatprep.subr.mxu0 0.0
  %547 = vmatpush1.msra.mxu0 0.0
  %548 = vmatprep.subr.mxu0 0.0
  %549 = vmatpush1.msra.mxu0 0.0
  %550 = vmatprep.subr.mxu0 0.0
  %551 = vmatpush1.msra.mxu0 0.0
  %552 = vmatprep.subr.mxu0 0.0
  %553 = vmatpush1.msra.mxu0 0.0
  %554 = vmatprep.subr.mxu0 0.0
  %555 = vmatpush1.msra.mxu0 0.0
  %556 = vmatprep.subr.mxu0 0.0
  %557 = vmatpush1.msra.mxu0 0.0
  %558 = vmatprep.subr.mxu0 0.0
  %559 = vmatpush1.msra.mxu0 0.0
  %560 = vmatprep.mubr.f32.mxu0 0.0
  %561 = vmatmul.mubr.f32.gmra.mrb[0].mxu0 %v494
  %v562 = vpop.f32.mrb[0].mxu0
  %v563 = vadd.f32 0.0, %v562
  %v564 = vpop.f32.mrb[0].mxu0
  %565 = vdwg.mxu0
  %v566 = vadd.f32 %v20, %v563
  %v567 = vtanh.pop %v566
  %s568 = scalar_lea.vmem %s3, 12
  %569 = vst.msk [vmem:[%s568] sm:$0x3] %vm106, %v567
  %v571 = vsel %vm26, %v567, 0
  %573 = vmatprep.subr.mxu0 0.0
  %574 = vmatpush1.msra.mxu0 %v22
  %575 = vmatprep.subr.mxu0 0.0
  %576 = vmatpush1.msra.mxu0 %v23
  %577 = vmatprep.subr.mxu0 0.0
  %578 = vmatpush1.msra.mxu0 %v32
  %579 = vmatprep.subr.mxu0 0.0
  %580 = vmatpush1.msra.mxu0 0.0
  %581 = vmatprep.subr.mxu0 0.0
  %582 = vmatpush1.msra.mxu0 0.0
  %583 = vmatprep.subr.mxu0 0.0
  %584 = vmatpush1.msra.mxu0 0.0
  %585 = vmatprep.subr.mxu0 0.0
  %586 = vmatpush1.msra.mxu0 0.0
  %587 = vmatprep.subr.mxu0 0.0
  %588 = vmatpush1.msra.mxu0 0.0
  %589 = vmatprep.subr.mxu0 0.0
  %590 = vmatpush1.msra.mxu0 0.0
  %591 = vmatprep.subr.mxu0 0.0
  %592 = vmatpush1.msra.mxu0 0.0
  %593 = vmatprep.subr.mxu0 0.0
  %594 = vmatpush1.msra.mxu0 0.0
  %595 = vmatprep.subr.mxu0 0.0
  %596 = vmatpush1.msra.mxu0 0.0
  %597 = vmatprep.subr.mxu0 0.0
  %598 = vmatpush1.msra.mxu0 0.0
  %599 = vmatprep.subr.mxu0 0.0
  %600 = vmatpush1.msra.mxu0 0.0
  %601 = vmatprep.subr.mxu0 0.0
  %602 = vmatpush1.msra.mxu0 0.0
  %603 = vmatprep.subr.mxu0 0.0
  %604 = vmatpush1.msra.mxu0 0.0
  %605 = vmatprep.subr.mxu0 0.0
  %606 = vmatpush1.msra.mxu0 0.0
  %607 = vmatprep.subr.mxu0 0.0
  %608 = vmatpush1.msra.mxu0 0.0
  %609 = vmatprep.subr.mxu0 0.0
  %610 = vmatpush1.msra.mxu0 0.0
  %611 = vmatprep.subr.mxu0 0.0
  %612 = vmatpush1.msra.mxu0 0.0
  %613 = vmatprep.subr.mxu0 0.0
  %614 = vmatpush1.msra.mxu0 0.0
  %615 = vmatprep.subr.mxu0 0.0
  %616 = vmatpush1.msra.mxu0 0.0
  %617 = vmatprep.subr.mxu0 0.0
  %618 = vmatpush1.msra.mxu0 0.0
  %619 = vmatprep.subr.mxu0 0.0
  %620 = vmatpush1.msra.mxu0 0.0
  %621 = vmatprep.subr.mxu0 0.0
  %622 = vmatpush1.msra.mxu0 0.0
  %623 = vmatprep.subr.mxu0 0.0
  %624 = vmatpush1.msra.mxu0 0.0
  %625 = vmatprep.subr.mxu0 0.0
  %626 = vmatpush1.msra.mxu0 0.0
  %627 = vmatprep.subr.mxu0 0.0
  %628 = vmatpush1.msra.mxu0 0.0
  %629 = vmatprep.subr.mxu0 0.0
  %630 = vmatpush1.msra.mxu0 0.0
  %631 = vmatprep.subr.mxu0 0.0
  %632 = vmatpush1.msra.mxu0 0.0
  %633 = vmatprep.subr.mxu0 0.0
  %634 = vmatpush1.msra.mxu0 0.0
  %635 = vmatprep.subr.mxu0 0.0
  %636 = vmatpush1.msra.mxu0 0.0
  %637 = vmatprep.mubr.f32.mxu0 0.0
  %638 = vmatmul.mubr.f32.gmra.mrb[0].mxu0 %v571
  %v639 = vpop.f32.mrb[0].mxu0
  %v640 = vadd.f32 0.0, %v639
  %v641 = vpop.f32.mrb[0].mxu0
  %642 = vdwg.mxu0
  %v643 = vadd.f32 %v21, %v640
  %v644 = vtanh.pop %v643
  %s645 = scalar_lea.vmem %s3, 14
  %646 = vst.msk [vmem:[%s645] sm:$0x3] %vm106, %v644
  // Predicated region
  $region14: #{rnn_forward.1} parent=0 // pred_check
    _
  $region15: #{rnn_forward.1} parent=0 // pred_check_branch
    %648 = sbr.rel (0) target = $region17
  $region16: #{rnn_forward.1} parent=0 // pred_region
    _
  $region17: #{rnn_forward.1} parent=0 // pred_fallthru
    _
  // Predicated region
  $region18: #{rnn_forward.1} parent=0 // pred_check
    _
  $region19: #{rnn_forward.1} parent=0 // pred_check_branch
    %650 = sbr.rel (0) target = $region21
  $region20: #{rnn_forward.1} parent=0 // pred_region
    _
  $region21: #{rnn_forward.1} parent=0 // pred_fallthru
    _

</llo_original>
